<compile_context>
chip_gen: v7x
topology: tpu7x:2x2x1
jax: 0.10.0
libtpu: 0.0.40
codegen_flags: <defaults>
</compile_context>

<pallas_src>
import functools

import jax
import jax.numpy as jnp
from jax.experimental import pallas as pl
from jax.experimental.pallas import tpu as pltpu

LANE = 128
DEFAULT_BLOCK_ROWS = 1024  # 1024 * 128 * 4 B = 512 KiB per f32 stream buffer


def _static_pow(x, p):
    """x**p for a static exponent.  Integer exponents become VPU multiplies
    (no EUP exp/log); non-integer exponents fall back to jnp.power."""
    pf = float(p)
    if pf.is_integer() and 0.0 <= pf <= 16.0:
        n = int(pf)
        if n == 0:
            return jnp.ones_like(x)
        acc = None
        base = x
        while n:
            if n & 1:
                acc = base if acc is None else acc * base
            n >>= 1
            if n:
                base = base * base
        return acc
    return jnp.power(x, pf)


def _focal_elems(x, t, *, alpha, gamma, beta):
    """Elementwise NegWeightedPixelWiseFocalLoss in f32."""
    x = x.astype(jnp.float32)
    t = t.astype(jnp.float32)

    # masked_target = target.long().float()   (truncation toward zero)
    mt = jnp.trunc(t)

    # torchvision.ops.sigmoid_focal_loss(x, mt, alpha, gamma, 'none'); the
    # sigmoid shares exp(-|x|) with the numerically stable BCE term.
    e = jnp.exp(-jnp.abs(x))
    log1pe = jnp.log1p(e)
    ce = jnp.maximum(x, 0.0) - x * mt + log1pe            # BCE with logits
    s = 1.0 / (1.0 + e)                                   # sigmoid(|x|)
    p = jnp.where(x >= 0.0, s, 1.0 - s)                   # sigmoid(x)
    p_t = p * mt + (1.0 - p) * (1.0 - mt)
    loss = ce * _static_pow(1.0 - p_t, gamma)
    if alpha >= 0:
        loss = (alpha * mt + (1.0 - alpha) * (1.0 - mt)) * loss

    # neg_weights = (1 - target)^beta, forced to 1.0 where masked_target == 1
    # (in-place boolean assignment expressed as a select).
    neg_w = _static_pow(1.0 - t, beta)
    neg_w = jnp.where(mt == 1.0, jnp.float32(1.0), neg_w)
    return loss * neg_w


def _focal_none_kernel(x_ref, t_ref, o_ref, *, alpha, gamma, beta):
    o_ref[...] = _focal_elems(
        x_ref[...], t_ref[...], alpha=alpha, gamma=gamma, beta=beta
    ).astype(o_ref.dtype)


def _focal_sum_kernel(x_ref, t_ref, o_ref, *, alpha, gamma, beta, n_valid,
                      block_rows):
    i = pl.program_id(0)

    @pl.when(i == 0)
    def _():
        o_ref[...] = jnp.zeros_like(o_ref)

    loss = _focal_elems(x_ref[...], t_ref[...],
                        alpha=alpha, gamma=gamma, beta=beta)
    # Mask lane-padded tail elements and any out-of-bounds rows of a partial
    # final block so they don't corrupt the fused reduction.
    row_ids = jax.lax.broadcasted_iota(jnp.int32, loss.shape, 0)
    lane_ids = jax.lax.broadcasted_iota(jnp.int32, loss.shape, 1)
    gidx = (i * block_rows + row_ids) * LANE + lane_ids
    loss = jnp.where(gidx < n_valid, loss, jnp.float32(0.0))
    o_ref[...] += jnp.sum(loss, axis=0, keepdims=True)


def neg_weighted_pixelwise_focal_loss(inputs, targets, *, beta=4.0, alpha=-1.0,
                                      gamma=2.0, reduction="none",
                                      block_rows=None):
    """Pallas TPU implementation of NegWeightedPixelWiseFocalLoss.forward."""
    assert inputs.shape == targets.shape
    orig_shape = inputs.shape
    out_dtype = inputs.dtype
    n = int(inputs.size)

    # Flatten to a lane-dense (rows, 128) slab; pad only the ragged lane tail
    # (no-op copy avoided entirely when n is already a multiple of 128).
    pad = (-n) % LANE
    x_flat = inputs.reshape(-1)
    t_flat = targets.reshape(-1)
    if pad:
        x_flat = jnp.pad(x_flat, (0, pad))
        t_flat = jnp.pad(t_flat, (0, pad))
    rows = (n + pad) // LANE
    x2 = x_flat.reshape(rows, LANE)
    t2 = t_flat.reshape(rows, LANE)

    if block_rows is None:
        block_rows = DEFAULT_BLOCK_ROWS
    block_rows = min(block_rows, rows)
    # Block shape must be (8, 128)-divisible unless it spans the full array.
    if block_rows != rows:
        block_rows = max(8, (block_rows // 8) * 8)
    grid = (pl.cdiv(rows, block_rows),)

    in_specs = [
        pl.BlockSpec((block_rows, LANE), lambda i: (i, 0)),
        pl.BlockSpec((block_rows, LANE), lambda i: (i, 0)),
    ]

    if reduction == "none":
        kernel = functools.partial(_focal_none_kernel, alpha=alpha,
                                   gamma=gamma, beta=beta)
        loss2 = pl.pallas_call(
            kernel,
            out_shape=jax.ShapeDtypeStruct((rows, LANE), out_dtype),
            grid_spec=pltpu.PrefetchScalarGridSpec(
                num_scalar_prefetch=0,
                grid=grid,
                in_specs=in_specs,
                out_specs=pl.BlockSpec((block_rows, LANE), lambda i: (i, 0)),
            ),
            compiler_params=pltpu.CompilerParams(
                dimension_semantics=("parallel",)),
        )(x2, t2)
        loss_flat = loss2.reshape(-1)
        if pad:
            loss_flat = loss_flat[:n]
        return loss_flat.reshape(orig_shape)

    if reduction in ("mean", "sum"):
        kernel = functools.partial(_focal_sum_kernel, alpha=alpha, gamma=gamma,
                                   beta=beta, n_valid=n, block_rows=block_rows)
        partial_lanes = pl.pallas_call(
            kernel,
            out_shape=jax.ShapeDtypeStruct((1, LANE), jnp.float32),
            grid_spec=pltpu.PrefetchScalarGridSpec(
                num_scalar_prefetch=0,
                grid=grid,
                in_specs=in_specs,
                out_specs=pl.BlockSpec((1, LANE), lambda i: (0, 0)),
            ),
            compiler_params=pltpu.CompilerParams(
                dimension_semantics=("arbitrary",)),
        )(x2, t2)
        total = jnp.sum(partial_lanes)
        return total / n if reduction == "mean" else total

    raise NotImplementedError(f"Invalid reduction mode: {reduction}")


def _reference(inputs, targets, *, beta=4.0, alpha=-1.0, gamma=2.0):
    """Pure-JAX mirror of the PyTorch module (for correctness checks)."""
    mt = jnp.trunc(targets)
    p = jax.nn.sigmoid(inputs)
    ce = (jnp.maximum(inputs, 0.0) - inputs * mt
          + jnp.log1p(jnp.exp(-jnp.abs(inputs))))
    p_t = p * mt + (1.0 - p) * (1.0 - mt)
    loss = ce * (1.0 - p_t) ** gamma
    if alpha >= 0:
        loss = (alpha * mt + (1.0 - alpha) * (1.0 - mt)) * loss
    neg_w = jnp.where(mt == 1.0, 1.0, (1.0 - targets) ** beta)
    return loss * neg_w


if __name__ == "__main__":
    key = jax.random.PRNGKey(0)

    def make_inputs(k, shape):
        k1, k2, k3 = jax.random.split(k, 3)
        logits = jax.random.normal(k1, shape, dtype=jnp.float32)
        # CenterNet-style heatmap target in [0, 1) with some exact 1.0 peaks.
        heat = jax.random.uniform(k2, shape, dtype=jnp.float32, maxval=0.999)
        peaks = jax.random.bernoulli(k3, 0.05, shape)
        return logits, jnp.where(peaks, jnp.float32(1.0), heat)

    # (shape, block_rows): primary case plus two cases exercising the tiled
    # grid, a partial final block, and a lane-padded tail with masked reduction.
    configs = [
        ((2, 4, 16, 16), None),
        ((2, 4, 16, 24), 16),
        ((2, 3, 17, 19), 8),
    ]

    for shape, br in configs:
        key, sub = jax.random.split(key)
        logits, target = make_inputs(sub, shape)
        ref = _reference(logits, target)

        out = neg_weighted_pixelwise_focal_loss(logits, target, block_rows=br)
        out = jax.block_until_ready(out)
        assert out.shape == shape
        assert jnp.allclose(out, ref, atol=1e-5, rtol=1e-5), \
            f"reduction='none' mismatch for {shape}"

        s = neg_weighted_pixelwise_focal_loss(logits, target,
                                              reduction="sum", block_rows=br)
        s = jax.block_until_ready(s)
        assert jnp.allclose(s, jnp.sum(ref), rtol=1e-4, atol=1e-3), \
            f"reduction='sum' mismatch for {shape}"

        m = neg_weighted_pixelwise_focal_loss(logits, target,
                                              reduction="mean", block_rows=br)
        m = jax.block_until_ready(m)
        assert jnp.allclose(m, jnp.mean(ref), rtol=1e-4, atol=1e-6), \
            f"reduction='mean' mismatch for {shape}"

    print("KERNEL_OK")
</pallas_src>

<mosaic_0001>
module attributes {stable_mosaic.version = 11 : i64} {
  func.func @_focal_none_kernel(%arg0: i32, %arg1: memref<16x128xf32, #tpu.memory_space<vmem>>, %arg2: memref<16x128xf32, #tpu.memory_space<vmem>>, %arg3: memref<16x128xf32, #tpu.memory_space<vmem>>) attributes {dimension_semantics = [#tpu.dimension_semantics<parallel>], iteration_bounds = array<i64: 1>, scalar_prefetch = 0 : i64, scratch_operands = 0 : i64, tpu.core_type = #tpu.core_type<tc>, window_params = [{transform_indices = @transform_0, window_bounds = array<i64: 16, 128>}, {transform_indices = @transform_1, window_bounds = array<i64: 16, 128>}, {transform_indices = @transform_2, window_bounds = array<i64: 16, 128>}]} {
    %c0 = arith.constant 0 : index
    %c0_0 = arith.constant 0 : index
    %0 = vector.load %arg1[%c0, %c0_0] : memref<16x128xf32, #tpu.memory_space<vmem>>, vector<16x128xf32>
    %c0_1 = arith.constant 0 : index
    %c0_2 = arith.constant 0 : index
    %1 = vector.load %arg2[%c0_1, %c0_2] : memref<16x128xf32, #tpu.memory_space<vmem>>, vector<16x128xf32>
    %cst = arith.constant 0.000000e+00 : f32
    %2 = vector.broadcast %cst : f32 to vector<16x128xf32>
    %3 = arith.cmpf olt, %1, %2 : vector<16x128xf32>
    %4 = math.ceil %1 : vector<16x128xf32>
    %5 = math.floor %1 : vector<16x128xf32>
    %6 = arith.select %3, %4, %5 : vector<16x128xi1>, vector<16x128xf32>
    %7 = math.absf %0 : vector<16x128xf32>
    %cst_3 = arith.constant 0.000000e+00 : f32
    %8 = vector.broadcast %cst_3 : f32 to vector<16x128xf32>
    %9 = arith.subf %8, %7 : vector<16x128xf32>
    %10 = math.exp %9 : vector<16x128xf32>
    %11 = math.log1p %10 : vector<16x128xf32>
    %cst_4 = arith.constant 0.000000e+00 : f32
    %12 = vector.broadcast %cst_4 : f32 to vector<16x128xf32>
    %13 = arith.maximumf %0, %12 : vector<16x128xf32>
    %14 = arith.mulf %0, %6 : vector<16x128xf32>
    %15 = arith.subf %13, %14 : vector<16x128xf32>
    %16 = arith.addf %15, %11 : vector<16x128xf32>
    %cst_5 = arith.constant 1.000000e+00 : f32
    %17 = vector.broadcast %cst_5 : f32 to vector<16x128xf32>
    %18 = arith.addf %17, %10 : vector<16x128xf32>
    %cst_6 = arith.constant 1.000000e+00 : f32
    %19 = vector.broadcast %cst_6 : f32 to vector<16x128xf32>
    %20 = arith.divf %19, %18 : vector<16x128xf32>
    %cst_7 = arith.constant 0.000000e+00 : f32
    %21 = vector.broadcast %cst_7 : f32 to vector<16x128xf32>
    %22 = arith.cmpf oge, %0, %21 : vector<16x128xf32>
    %cst_8 = arith.constant 1.000000e+00 : f32
    %23 = vector.broadcast %cst_8 : f32 to vector<16x128xf32>
    %24 = arith.subf %23, %20 : vector<16x128xf32>
    %25 = arith.select %22, %20, %24 : vector<16x128xi1>, vector<16x128xf32>
    %26 = arith.mulf %25, %6 : vector<16x128xf32>
    %cst_9 = arith.constant 1.000000e+00 : f32
    %27 = vector.broadcast %cst_9 : f32 to vector<16x128xf32>
    %28 = arith.subf %27, %25 : vector<16x128xf32>
    %cst_10 = arith.constant 1.000000e+00 : f32
    %29 = vector.broadcast %cst_10 : f32 to vector<16x128xf32>
    %30 = arith.subf %29, %6 : vector<16x128xf32>
    %31 = arith.mulf %28, %30 : vector<16x128xf32>
    %32 = arith.addf %26, %31 : vector<16x128xf32>
    %cst_11 = arith.constant 1.000000e+00 : f32
    %33 = vector.broadcast %cst_11 : f32 to vector<16x128xf32>
    %34 = arith.subf %33, %32 : vector<16x128xf32>
    %35 = arith.mulf %34, %34 : vector<16x128xf32>
    %36 = arith.mulf %16, %35 : vector<16x128xf32>
    %cst_12 = arith.constant 1.000000e+00 : f32
    %37 = vector.broadcast %cst_12 : f32 to vector<16x128xf32>
    %38 = arith.subf %37, %1 : vector<16x128xf32>
    %39 = arith.mulf %38, %38 : vector<16x128xf32>
    %40 = arith.mulf %39, %39 : vector<16x128xf32>
    %cst_13 = arith.constant 1.000000e+00 : f32
    %41 = vector.broadcast %cst_13 : f32 to vector<16x128xf32>
    %42 = arith.cmpf oeq, %6, %41 : vector<16x128xf32>
    %cst_14 = arith.constant 1.000000e+00 : f32
    %43 = vector.broadcast %cst_14 : f32 to vector<16x128xf32>
    %44 = arith.select %42, %43, %40 : vector<16x128xi1>, vector<16x128xf32>
    %45 = arith.mulf %36, %44 : vector<16x128xf32>
    %c0_15 = arith.constant 0 : index
    %c0_16 = arith.constant 0 : index
    %46 = vector.load %arg3[%c0_15, %c0_16] : memref<16x128xf32, #tpu.memory_space<vmem>>, vector<16x128xf32>
    tpu.vector_store %arg3[%c0_15, %c0_16], %45 {strides = array<i32>} : memref<16x128xf32, #tpu.memory_space<vmem>>, vector<16x128xf32>,
    return
  }
  func.func @transform_0(%arg0: i32) -> (i32, i32) {
    %c0_i32 = arith.constant 0 : i32
    %c0_i32_0 = arith.constant 0 : i32
    return %arg0, %c0_i32 : i32, i32
  }
  func.func @transform_1(%arg0: i32) -> (i32, i32) {
    %c0_i32 = arith.constant 0 : i32
    %c0_i32_0 = arith.constant 0 : i32
    return %arg0, %c0_i32 : i32, i32
  }
  func.func @transform_2(%arg0: i32) -> (i32, i32) {
    %c0_i32 = arith.constant 0 : i32
    %c0_i32_0 = arith.constant 0 : i32
    return %arg0, %c0_i32 : i32, i32
  }
}

</mosaic_0001>

<llo_original>
// kernel: tpu_custom_call.1
$region0: #{tpu_custom_call.1}
  #allocation0 [shape = 'u32[]', space=smem, size = 0x4, offset = 0x4, fixed_abs, tag = 'smem constant byte address 0x4 - core index']
  #allocation1 [shape = 'u32[144,128]{1,0:T(1,128)}', space=vmem, size = 0x12000, scoped, tag = 'internal scratch']
  %s0 = inlined_call_operand.hbm [shape: f32[16,128], index: 0, kind: input, shape index: {}]
  %s1 = inlined_call_operand.hbm [shape: f32[16,128], index: 1, kind: input, shape index: {}]
  %s2 = inlined_call_operand.hbm [shape: f32[16,128], index: 2, kind: output, shape index: {}]
  %s3 = sld [smem:[#allocation0]]
  $region26: #{tpu_custom_call.1} parent=0
    _
  %s5 = ssub.s32 1, %s3
  %s6 = scalar_select 0, %s5, %s3
  $region1: #{tpu_custom_call.1} parent=0
    #allocation2 [shape = 'u8[8192]{0}', space=vmem, size = 0x2000, scoped, tag = 'input window, operand 0, single buffered']
    #allocation3 [shape = 's32[1]{0}', space=sflag, size = 0x4, scoped, tag = 'scoped memory for tpu_custom_call.1']
    #allocation4 [shape = 's32[1]{0}', space=sflag, size = 0x4, scoped, tag = 'scoped memory for tpu_custom_call.1']
    #allocation5 [shape = 'u8[8192]{0}', space=vmem, size = 0x2000, scoped, tag = 'input window, operand 1, single buffered']
    #allocation6 [shape = 's32[1]{0}', space=sflag, size = 0x4, scoped, tag = 'scoped memory for tpu_custom_call.1']
    #allocation7 [shape = 'u8[8192]{0}', space=vmem, size = 0x2000, scoped, tag = 'output window, operand 0, single buffered']
    %7 = vsyncpa [#allocation3], 0
    %8 = vsyncpa [#allocation6], 0
    %9 = vsyncpa [#allocation4], 0
    // Predicated region
    $region2: #{tpu_custom_call.1} parent=1 // pred_check
      _
    $region3: #{tpu_custom_call.1} parent=1 // pred_check_branch
      %11 = sbr.rel (0) target = $region5
    $region4: #{tpu_custom_call.1} parent=1 // pred_region
      %s13 = ssub.s32 256, 256
      %14 = vsyncadd [#allocation3], %s13
      %s15 = sshll.u32 [#allocation2], 4
      %s16 = int_to_ptr.vmem [resolvable:$true] %s15
      %21 = dma.hbm_to_vmem [thread:$0]  %s0, 256, %s16, [#allocation3], 128, 128, 8
    $region5: #{tpu_custom_call.1} parent=1 // pred_fallthru
      _
    // Predicated region
    $region6: #{tpu_custom_call.1} parent=1 // pred_check
      _
    $region7: #{tpu_custom_call.1} parent=1 // pred_check_branch
      %23 = sbr.rel (0) target = $region9
    $region8: #{tpu_custom_call.1} parent=1 // pred_region
      %s25 = ssub.s32 256, 256
      %26 = vsyncadd [#allocation6], %s25
      %s27 = sshll.u32 [#allocation5], 4
      %s28 = int_to_ptr.vmem [resolvable:$true] %s27
      %33 = dma.hbm_to_vmem [thread:$0]  %s1, 256, %s28, [#allocation6], 128, 128, 8
    $region9: #{tpu_custom_call.1} parent=1 // pred_fallthru
      _
    // Predicated region
    $region10: #{tpu_custom_call.1} parent=1 // pred_check
      _
    $region11: #{tpu_custom_call.1} parent=1 // pred_check_branch
      %35 = sbr.rel (0) target = $region13
    $region12: #{tpu_custom_call.1} parent=1 // pred_region
      %36 = dma.done [#allocation3], 256
    $region13: #{tpu_custom_call.1} parent=1 // pred_fallthru
      _
    // Predicated region
    $region14: #{tpu_custom_call.1} parent=1 // pred_check
      _
    $region15: #{tpu_custom_call.1} parent=1 // pred_check_branch
      %38 = sbr.rel (0) target = $region17
    $region16: #{tpu_custom_call.1} parent=1 // pred_region
      %39 = dma.done [#allocation6], 256
    $region17: #{tpu_custom_call.1} parent=1 // pred_fallthru
      _
    %v40 = vld [vmem:[#allocation2] sm:$0xff]
    %v41 = vld [vmem:[#allocation2 + $0x8] sm:$0xff]
    %v42 = vld [vmem:[#allocation5] sm:$0xff]
    %v43 = vld [vmem:[#allocation5 + $0x8] sm:$0xff]
    %vm44 = vcmp.lt.f32.partialorder %v42, 0.0
    %vm45 = vcmp.lt.f32.partialorder %v43, 0.0
    %v46 = vceil.f32 %v42
    %v47 = vceil.f32 %v43
    %v48 = vfloor.f32 %v42
    %v49 = vfloor.f32 %v43
    %v50 = vsel %vm44, %v46, %v48
    %v51 = vsel %vm45, %v47, %v49
    %v52 = vand.u32 2147483647, %v40
    %v53 = vand.u32 2147483647, %v41
    %v54 = vsub.f32 0.0, %v52
    %v55 = vsub.f32 0.0, %v53
    %v56 = vmul.f32 %v54, 1.442695
    %v57 = vpow.pop %v56
    %v58 = vmul.f32 %v55, 1.442695
    %v59 = vpow.pop %v58
    %v60 = vadd.f32 %v57, 1.0
    %v61 = vlog2.pop %v60
    %v62 = vmul.f32 %v61, 0.6931472
    %v63 = vmul.f32 -0.5, %v57
    %v64 = vadd.f32 %v63, 1.0
    %v65 = vmul.f32 %v64, %v57
    %v66 = vand.u32 2147483647, %v57
    %vm67 = vcmp.lt.f32.partialorder %v66, 0.0004427343
    %v68 = vsel %vm67, %v65, %v62
    %v69 = vadd.f32 %v59, 1.0
    %v70 = vlog2.pop %v69
    %v71 = vmul.f32 %v70, 0.6931472
    %v72 = vmul.f32 -0.5, %v59
    %v73 = vadd.f32 %v72, 1.0
    %v74 = vmul.f32 %v73, %v59
    %v75 = vand.u32 2147483647, %v59
    %vm76 = vcmp.lt.f32.partialorder %v75, 0.0004427343
    %v77 = vsel %vm76, %v74, %v71
    %v78 = vmax.f32 %v40, 0.0
    %v79 = vmax.f32 %v41, 0.0
    %v80 = vmul.f32 %v40, %v50
    %v81 = vmul.f32 %v41, %v51
    %v82 = vsub.f32 %v78, %v80
    %v83 = vsub.f32 %v79, %v81
    %v84 = vadd.f32 %v82, %v68
    %v85 = vadd.f32 %v83, %v77
    %v86 = vadd.f32 %v57, 1.0
    %v87 = vadd.f32 %v59, 1.0
    %v88 = vrcp.pop %v86
    %v89 = vmul.f32 1.0, %v88
    %v90 = vrcp.pop %v87
    %v91 = vmul.f32 1.0, %v90
    %vm92 = vcmp.ge.f32.partialorder %v40, 0.0
    %vm93 = vcmp.ge.f32.partialorder %v41, 0.0
    %v94 = vsub.f32 1.0, %v89
    %v95 = vsub.f32 1.0, %v91
    %v96 = vsel %vm92, %v89, %v94
    %v97 = vsel %vm93, %v91, %v95
    %v98 = vmul.f32 %v96, %v50
    %v99 = vmul.f32 %v97, %v51
    %v100 = vsub.f32 1.0, %v96
    %v101 = vsub.f32 1.0, %v97
    %v102 = vsub.f32 1.0, %v50
    %v103 = vsub.f32 1.0, %v51
    %v104 = vmul.f32 %v100, %v102
    %v105 = vmul.f32 %v101, %v103
    %v106 = vadd.f32 %v98, %v104
    %v107 = vadd.f32 %v99, %v105
    %v108 = vsub.f32 1.0, %v106
    %v109 = vsub.f32 1.0, %v107
    %v110 = vmul.f32 %v108, %v108
    %v111 = vmul.f32 %v109, %v109
    %v112 = vmul.f32 %v84, %v110
    %v113 = vmul.f32 %v85, %v111
    %v114 = vsub.f32 1.0, %v42
    %v115 = vsub.f32 1.0, %v43
    %v116 = vmul.f32 %v114, %v114
    %v117 = vmul.f32 %v115, %v115
    %v118 = vmul.f32 %v116, %v116
    %v119 = vmul.f32 %v117, %v117
    %vm120 = vcmp.eq.f32.partialorder %v50, 1.0
    %vm121 = vcmp.eq.f32.partialorder %v51, 1.0
    %v122 = vsel %vm120, 1.0, %v118
    %v123 = vsel %vm121, 1.0, %v119
    %v124 = vmul.f32 %v112, %v122
    %v125 = vmul.f32 %v113, %v123
    %126 = vst [vmem:[#allocation7] sm:$0xff] %v124
    %127 = vst [vmem:[#allocation7 + $0x8] sm:$0xff] %v125
    // Predicated region
    $region18: #{tpu_custom_call.1} parent=1 // pred_check
      _
    $region19: #{tpu_custom_call.1} parent=1 // pred_check_branch
      %129 = sbr.rel (0) target = $region21
    $region20: #{tpu_custom_call.1} parent=1 // pred_region
      %s131 = ssub.s32 256, 256
      %132 = vsyncadd [#allocation4], %s131
      %s133 = sshll.u32 [#allocation7], 4
      %s134 = int_to_ptr.vmem [resolvable:$true] %s133
      %139 = dma.vmem_to_hbm [thread:$0]  %s134, 256, %s2, [#allocation4], 128, 128, 8
    $region21: #{tpu_custom_call.1} parent=1 // pred_fallthru
      _
    // Predicated region
    $region22: #{tpu_custom_call.1} parent=1 // pred_check
      _
    $region23: #{tpu_custom_call.1} parent=1 // pred_check_branch
      %141 = sbr.rel (0) target = $region25
    $region24: #{tpu_custom_call.1} parent=1 // pred_region
      %142 = dma.done [#allocation4], 256
    $region25: #{tpu_custom_call.1} parent=1 // pred_fallthru
      _
    %143 = vsyncpa [#allocation3], 1
    %144 = vsyncpa [#allocation6], 1
    %145 = vsyncpa [#allocation4], 1

</llo_original>
